<compile_context>
chip_gen: v7x
topology: tpu7x:2x2x1
jax: 0.10.0
libtpu: 0.0.40
codegen_flags: <defaults>
</compile_context>

<pallas_src>
import functools

import numpy as np
import jax
import jax.numpy as jnp
from jax.experimental import pallas as pl
from jax.experimental.pallas import tpu as pltpu


def _round_up(v, m):
    return ((v + m - 1) // m) * m


def _tpu_vmem_bytes():
    """Physical per-TensorCore VMEM (64 MiB v7x, 128 MiB v5e/v6e); conservative fallback."""
    try:
        info = pltpu.get_tpu_info()
        for name in ("vmem_capacity_bytes", "vmem_size_bytes", "vmem_bytes"):
            v = getattr(info, name, None)
            if v:
                return int(v)
    except Exception:
        pass
    return 64 * 1024 * 1024


def _conv_norm_kernel(x_ref, w_ref, aux_ref, o_ref, *rest, K, stride, C_in,
                      Wph, W_out, H_out, M, mode, use_patch):
    """One (image, H_out-tile) grid step.

    x_ref  : (G, L_tile)        bf16 flattened polyphase input slab (tile + (K-1)-row halo)
    w_ref  : (C_out, K*K*C_in)  bf16 lane-dense conv weight
    aux_ref: (1, M) f32 valid mask (norm modes)  |  (C_out, 1) f32 bias (tanh)
    o_ref  : (C_out, M)         activation (fused modes) or raw f32 conv (tiled norm)
    rest   : [stats_ref (C_out, 128) f32]  iff mode == "norm_tiled"
             [patch_ref (K*K*C_in, M) bf16] iff use_patch
    """
    rest = list(rest)
    stats_ref = rest.pop(0) if mode == "norm_tiled" else None
    patch_ref = rest.pop(0) if use_patch else None

    s = stride
    C_out = w_ref.shape[0]

    if use_patch:
        # Tiny C_in: materialize the im2col patch once, single big MXU dot.
        for ky in range(K):
            for kx in range(K):
                t = ky * K + kx
                ph = (ky % s) * s + (kx % s)
                off = (ky // s) * Wph + (kx // s)
                patch_ref[t * C_in:(t + 1) * C_in, :] = (
                    x_ref[ph * C_in:(ph + 1) * C_in, off:off + M])
        acc = jnp.dot(w_ref[...], patch_ref[...],
                      preferred_element_type=jnp.float32)            # (C_out, M) f32
    else:
        # Real channel counts: K*K tap-accumulated dots, no (KKC, M) VMEM duplication.
        acc = jnp.zeros((C_out, M), jnp.float32)
        for ky in range(K):
            for kx in range(K):
                t = ky * K + kx
                ph = (ky % s) * s + (kx % s)
                off = (ky // s) * Wph + (kx // s)
                acc = acc + jnp.dot(
                    w_ref[:, t * C_in:(t + 1) * C_in],
                    x_ref[ph * C_in:(ph + 1) * C_in, off:off + M],
                    preferred_element_type=jnp.float32)

    if mode == "tanh":                                               # "last" block
        o_ref[...] = jnp.tanh(acc + aux_ref[...]).astype(o_ref.dtype)

    elif mode == "norm_fused":                                       # whole image = 1 tile
        m = aux_ref[...]                     # (1, M); broadcast once, reused via accm
        accm = acc * m
        inv_cnt = 1.0 / float(H_out * W_out)
        mean = jnp.sum(accm, axis=1, keepdims=True) * inv_cnt
        ex2 = jnp.sum(accm * acc, axis=1, keepdims=True) * inv_cnt   # masked E[x^2]
        var = jnp.maximum(ex2 - mean * mean, 0.0)
        o_ref[...] = jnp.maximum(
            (acc - mean) * jax.lax.rsqrt(var + 1e-5), 0.0).astype(o_ref.dtype)

    else:  # "norm_tiled": raw conv out + cross-tile per-channel sum / sum-sq accumulation
        t_idx = pl.program_id(1)

        @pl.when(t_idx == 0)
        def _():
            stats_ref[...] = jnp.zeros_like(stats_ref)

        m = aux_ref[...]
        accm = acc * m
        s1 = jnp.sum(accm, axis=1, keepdims=True)                    # (C_out, 1)
        s2 = jnp.sum(accm * acc, axis=1, keepdims=True)
        lane = jax.lax.broadcasted_iota(jnp.int32, (C_out, 128), 1)
        upd = jnp.where(lane == 0, s1, 0.0) + jnp.where(lane == 1, s2, 0.0)
        stats_ref[...] = stats_ref[...] + upd
        o_ref[...] = acc.astype(o_ref.dtype)                         # normalized in pass 2


def _flatten_polyphase(x_pad, stride, Hph, Wph, L_total):
    """(N, C, Hp, Wp) padded input -> (N, stride*stride*C, L_total) flattened phases."""
    N, C, Hp, Wp = x_pad.shape
    if stride == 1:
        flat = x_pad.reshape(N, C, Hp * Wp)
    else:
        phases = []
        for a in range(stride):
            for b in range(stride):
                ph = x_pad[:, :, a::stride, b::stride]
                ph = jnp.pad(ph, ((0, 0), (0, 0),
                                  (0, Hph - ph.shape[2]),
                                  (0, Wph - ph.shape[3])))
                phases.append(ph.reshape(N, C, Hph * Wph))
        flat = jnp.concatenate(phases, axis=1)
    if L_total > flat.shape[-1]:
        flat = jnp.pad(flat, ((0, 0), (0, 0), (0, L_total - flat.shape[-1])))
    return flat


def _conv_norm_block(x, w, b, *, stride=1, first=False, last=False, tile_rows=None):
    """Pallas implementation of ConvNormBlock.forward (NCHW, PyTorch-compatible).

    x: (N, C_in, H, W),  w: (C_out, C_in, K, K),  b: (C_out,)
    tile_rows: optional override of the H_out tile size (None -> derived from VMEM).
    """
    N, C_in, H, W = x.shape
    C_out, _, K, _ = w.shape
    s = int(stride)

    # --- padding (reflection for first/last, zero otherwise); bf16 MXU operands ---
    xb = x.astype(jnp.bfloat16)
    if first or last:
        pad = 3
        assert H > pad and W > pad, "ReflectionPad2d(3) needs H, W > 3"
        x_pad = jnp.pad(xb, ((0, 0), (0, 0), (pad, pad), (pad, pad)), mode="reflect")
    else:
        pad = 1
        x_pad = jnp.pad(xb, ((0, 0), (0, 0), (pad, pad), (pad, pad)))

    Hp, Wp = H + 2 * pad, W + 2 * pad
    H_out = (Hp - K) // s + 1
    W_out = (Wp - K) // s + 1
    Hph = -(-Hp // s)                       # per-phase padded height (ceil)
    Wph = -(-Wp // s)                       # per-phase padded width
    Dk = (K - 1) // s
    G = s * s * C_in
    KKC = K * K * C_in
    use_patch = C_in < 64                   # im2col patch only for tiny channel counts

    # --- per-generation VMEM budget and H_out tile size -------------------------------
    phys_vmem = _tpu_vmem_bytes()
    vmem_limit = int(phys_vmem * 0.85)      # ~54 MiB on v7x, ~108 MiB on v5e/v6e
    budget = int(phys_vmem * 0.60)          # headroom for double-buffering + compiler

    def _est(th):
        m_t = _round_up(th * Wph, 128)
        l_t = _round_up(m_t + Dk * Wph + Dk, 128)
        v = 2 * G * l_t * 2                 # x slab (bf16, double buffered)
        v += 2 * C_out * KKC * 2            # weight block
        v += 2 * C_out * m_t * 4            # output tile (f32, double buffered)
        v += C_out * m_t * 4                # live f32 accumulator
        if use_patch:
            v += KKC * m_t * 2              # im2col patch scratch (bf16)
        v += C_out * 128 * 4                # stats accumulator
        return v

    if tile_rows is not None:
        TH = max(1, min(int(tile_rows), H_out))
    else:
        TH = H_out
        while TH > 1 and _est(TH) > budget:
            TH -= 1
    T = -(-H_out // TH)

    M = _round_up(TH * Wph, 128)            # lane-dense tile width (mult. of 128)
    L_tile = _round_up(M + Dk * Wph + Dk, 128)
    L_total = max(Hph * Wph, (T - 1) * TH * Wph + L_tile)

    x_flat = _flatten_polyphase(x_pad, s, Hph, Wph, L_total)
    if T == 1:
        x_tiles = x_flat[:, None, :, :L_tile]
    else:                                   # (N, T, G, L_tile) slabs with (K-1)-row halo
        x_tiles = jnp.stack(
            [x_flat[:, :, t * TH * Wph: t * TH * Wph + L_tile] for t in range(T)],
            axis=1)

    # Lane-dense bf16 2-D weight matching patch-row order ((ky*K + kx)*C_in + c).
    # NOTE: at real channel counts pad C_out / KKC to the MXU native size (128 v5e,
    # 256 v6e/v7x); the toy demo shapes underfill the MXU regardless.
    w2d = jnp.transpose(w, (0, 2, 3, 1)).reshape(C_out, KKC).astype(jnp.bfloat16)

    if last:
        mode = "tanh"
        aux = b.reshape(C_out, 1).astype(jnp.float32)
        aux_spec = pl.BlockSpec((C_out, 1), lambda n, t: (0, 0))
    else:
        mode = "norm_fused" if T == 1 else "norm_tiled"
        # Static per-tile valid-column mask (garbage lanes / overcomputed rows = 0).
        cols = np.arange(M)
        col_ok = (cols % Wph < W_out) & (cols < TH * Wph)
        rows = cols // Wph
        mask = np.stack([(col_ok & (t * TH + rows < H_out)).astype(np.float32)
                         for t in range(T)])[:, None, :]            # (T, 1, M)
        aux = jnp.asarray(mask)
        aux_spec = pl.BlockSpec((None, 1, M), lambda n, t: (t, 0, 0))

    kernel = functools.partial(
        _conv_norm_kernel, K=K, stride=s, C_in=C_in, Wph=Wph, W_out=W_out,
        H_out=H_out, M=M, mode=mode, use_patch=use_patch)

    raw_dtype = jnp.float32 if mode == "norm_tiled" else x.dtype
    out_shapes = [jax.ShapeDtypeStruct((N, T, C_out, M), raw_dtype)]
    out_specs = [pl.BlockSpec((None, None, C_out, M), lambda n, t: (n, t, 0, 0))]
    if mode == "norm_tiled":
        out_shapes.append(jax.ShapeDtypeStruct((N, C_out, 128), jnp.float32))
        out_specs.append(pl.BlockSpec((None, C_out, 128), lambda n, t: (n, 0, 0)))

    in_specs = [
        pl.BlockSpec((None, None, G, L_tile), lambda n, t: (n, t, 0, 0)),
        pl.BlockSpec((C_out, KKC), lambda n, t: (0, 0)),
        aux_spec,
    ]
    scratch = [pltpu.VMEM((KKC, M), jnp.bfloat16)] if use_patch else []

    # Stats accumulate across the tile axis -> it must be "arbitrary" in that mode.
    t_sem = "arbitrary" if mode == "norm_tiled" else "parallel"

    result = pl.pallas_call(
        kernel,
        out_shape=tuple(out_shapes) if len(out_shapes) > 1 else out_shapes[0],
        grid_spec=pltpu.PrefetchScalarGridSpec(
            num_scalar_prefetch=0,
            grid=(N, T),
            in_specs=in_specs,
            out_specs=tuple(out_specs) if len(out_specs) > 1 else out_specs[0],
            scratch_shapes=scratch,
        ),
        compiler_params=pltpu.CompilerParams(
            dimension_semantics=("parallel", t_sem),
            vmem_limit_bytes=vmem_limit),
    )(x_tiles, w2d, aux)

    if mode == "norm_tiled":
        raw, stats = result
        inv_cnt = 1.0 / float(H_out * W_out)
        mean = stats[:, :, 0] * inv_cnt                              # (N, C_out)
        var = jnp.maximum(stats[:, :, 1] * inv_cnt - mean * mean, 0.0)
        inv_std = jax.lax.rsqrt(var + 1e-5)
        # Cheap second pass: pure elementwise, fuses with the slice below under jit.
        y = jnp.maximum((raw - mean[:, None, :, None]) * inv_std[:, None, :, None], 0.0)
    else:
        y = result

    # Drop overcomputed lanes/rows; rearrange tiles back to (N, C_out, H_out, W_out).
    y = y[..., :TH * Wph].reshape(N, T, C_out, TH, Wph)
    y = jnp.transpose(y, (0, 2, 1, 3, 4)).reshape(N, C_out, T * TH, Wph)
    return y[:, :, :H_out, :W_out].astype(x.dtype)


conv_norm_block = jax.jit(
    _conv_norm_block, static_argnames=("stride", "first", "last", "tile_rows"))


# ---------------- pure-JAX reference (for correctness check) ----------------
def _reference(x, w, b, *, stride, first=False, last=False):
    if first or last:
        x_pad = jnp.pad(x, ((0, 0), (0, 0), (3, 3), (3, 3)), mode="reflect")
    else:
        x_pad = jnp.pad(x, ((0, 0), (0, 0), (1, 1), (1, 1)))
    y = jax.lax.conv_general_dilated(
        x_pad, w, window_strides=(stride, stride), padding="VALID",
        dimension_numbers=("NCHW", "OIHW", "NCHW"))
    y = y + b.reshape(1, -1, 1, 1)
    if last:
        return jnp.tanh(y)
    mean = jnp.mean(y, axis=(2, 3), keepdims=True)
    var = jnp.mean((y - mean) ** 2, axis=(2, 3), keepdims=True)
    y = (y - mean) * jax.lax.rsqrt(var + 1e-5)
    return jnp.maximum(y, 0.0)


def _make_params(key, c_in, c_out, k):
    kw, kb = jax.random.split(key)
    fan_in = c_in * k * k
    bound = 1.0 / jnp.sqrt(fan_in)
    w = jax.random.uniform(kw, (c_out, c_in, k, k), jnp.float32, -bound, bound)
    b = jax.random.uniform(kb, (c_out,), jnp.float32, -bound, bound)
    return w, b


if __name__ == "__main__":
    key = jax.random.PRNGKey(0)
    kx_, k1, k2, k3, k4 = jax.random.split(key, 5)

    x = jax.random.normal(kx_, (2, 4, 16, 16), jnp.float32)   # NCHW

    def q(a):   # bf16 quantization applied to the reference's MXU operands
        return a.astype(jnp.bfloat16).astype(jnp.float32)

    # middle block: Conv(k=3, s=1, pad=1) + InstanceNorm + ReLU (single fused tile)
    w1, b1 = _make_params(k1, 4, 8, 3)
    out_mid = conv_norm_block(x, w1, b1, stride=1)
    ref_mid = _reference(q(x), q(w1), b1, stride=1)

    # same block with a forced small H-tile -> exercises the cross-tile stats path
    out_mid_t = conv_norm_block(x, w1, b1, stride=1, tile_rows=5)

    # downsampling block: Conv(k=3, s=2, pad=1) + InstanceNorm + ReLU
    w4, b4 = _make_params(k4, 4, 8, 3)
    out_down = conv_norm_block(x, w4, b4, stride=2)
    ref_down = _reference(q(x), q(w4), b4, stride=2)

    # first block: ReflectionPad(3) + Conv(k=7, s=1) + InstanceNorm + ReLU
    w2, b2 = _make_params(k2, 4, 8, 7)
    out_first = conv_norm_block(x, w2, b2, stride=1, first=True)
    ref_first = _reference(q(x), q(w2), b2, stride=1, first=True)

    # last block: ReflectionPad(3) + Conv(k=7, s=1) + Tanh
    w3, b3 = _make_params(k3, 4, 4, 7)
    out_last = conv_norm_block(x, w3, b3, stride=1, last=True)
    ref_last = _reference(q(x), q(w3), b3, stride=1, last=True)

    jax.block_until_ready((out_mid, out_mid_t, out_down, out_first, out_last))

    assert out_mid.shape == (2, 8, 16, 16)
    assert out_mid_t.shape == (2, 8, 16, 16)
    assert out_down.shape == (2, 8, 8, 8)
    assert out_first.shape == (2, 8, 16, 16)
    assert out_last.shape == (2, 4, 16, 16)

    tol = dict(atol=2e-3, rtol=2e-3)
    assert jnp.allclose(out_mid, ref_mid, **tol)
    assert jnp.allclose(out_mid_t, ref_mid, **tol)
    assert jnp.allclose(out_down, ref_down, **tol)
    assert jnp.allclose(out_first, ref_first, **tol)
    assert jnp.allclose(out_last, ref_last, **tol)

    print("KERNEL_OK")
</pallas_src>

<mosaic_0001>
module attributes {stable_mosaic.version = 11 : i64} {
  func.func @_conv_norm_kernel(%arg0: i32, %arg1: i32, %arg2: memref<1x1x4x512xbf16, #tpu.memory_space<vmem>>, %arg3: memref<8x36xbf16, #tpu.memory_space<vmem>>, %arg4: memref<1x1x384xf32, #tpu.memory_space<vmem>>, %arg5: memref<1x1x8x384xf32, #tpu.memory_space<vmem>>, %arg6: memref<36x384xbf16, #tpu.memory_space<vmem>>) attributes {dimension_semantics = [#tpu.dimension_semantics<parallel>, #tpu.dimension_semantics<parallel>], iteration_bounds = array<i64: 2, 1>, scalar_prefetch = 0 : i64, scratch_operands = 1 : i64, tpu.core_type = #tpu.core_type<tc>, window_params = [{transform_indices = @transform_0, window_bounds = array<i64: 1, 1, 4, 512>}, {pipeline_mode = #tpu.pipeline_mode<synchronous>, transform_indices = @transform_1, window_bounds = array<i64: 8, 36>}, {transform_indices = @transform_2, window_bounds = array<i64: 1, 1, 384>}, {transform_indices = @transform_3, window_bounds = array<i64: 1, 1, 8, 384>}]} {
    %c0 = arith.constant 0 : index
    %c0_0 = arith.constant 0 : index
    %c0_1 = arith.constant 0 : index
    %c0_2 = arith.constant 0 : index
    %0 = vector.load %arg2[%c0, %c0_0, %c0_1, %c0_2] : memref<1x1x4x512xbf16, #tpu.memory_space<vmem>>, vector<1x1x4x384xbf16>
    %1 = vector.shape_cast %0 : vector<1x1x4x384xbf16> to vector<4x384xbf16>
    %c0_3 = arith.constant 0 : index
    %c0_4 = arith.constant 0 : index
    %2 = vector.load %arg6[%c0_3, %c0_4] : memref<36x384xbf16, #tpu.memory_space<vmem>>, vector<4x384xbf16>
    tpu.vector_store %arg6[%c0_3, %c0_4], %1 {strides = array<i32>} : memref<36x384xbf16, #tpu.memory_space<vmem>>, vector<4x384xbf16>,
    %c0_5 = arith.constant 0 : index
    %c0_6 = arith.constant 0 : index
    %c0_7 = arith.constant 0 : index
    %c1 = arith.constant 1 : index
    %3 = vector.load %arg2[%c0_5, %c0_6, %c0_7, %c1] : memref<1x1x4x512xbf16, #tpu.memory_space<vmem>>, vector<1x1x4x384xbf16>
    %4 = vector.shape_cast %3 : vector<1x1x4x384xbf16> to vector<4x384xbf16>
    %c4 = arith.constant 4 : index
    %c0_8 = arith.constant 0 : index
    %5 = vector.load %arg6[%c4, %c0_8] : memref<36x384xbf16, #tpu.memory_space<vmem>>, vector<4x384xbf16>
    tpu.vector_store %arg6[%c4, %c0_8], %4 {strides = array<i32>} : memref<36x384xbf16, #tpu.memory_space<vmem>>, vector<4x384xbf16>,
    %c0_9 = arith.constant 0 : index
    %c0_10 = arith.constant 0 : index
    %c0_11 = arith.constant 0 : index
    %c2 = arith.constant 2 : index
    %6 = vector.load %arg2[%c0_9, %c0_10, %c0_11, %c2] : memref<1x1x4x512xbf16, #tpu.memory_space<vmem>>, vector<1x1x4x384xbf16>
    %7 = vector.shape_cast %6 : vector<1x1x4x384xbf16> to vector<4x384xbf16>
    %c8 = arith.constant 8 : index
    %c0_12 = arith.constant 0 : index
    %8 = vector.load %arg6[%c8, %c0_12] : memref<36x384xbf16, #tpu.memory_space<vmem>>, vector<4x384xbf16>
    tpu.vector_store %arg6[%c8, %c0_12], %7 {strides = array<i32>} : memref<36x384xbf16, #tpu.memory_space<vmem>>, vector<4x384xbf16>,
    %c0_13 = arith.constant 0 : index
    %c0_14 = arith.constant 0 : index
    %c0_15 = arith.constant 0 : index
    %c18 = arith.constant 18 : index
    %9 = vector.load %arg2[%c0_13, %c0_14, %c0_15, %c18] : memref<1x1x4x512xbf16, #tpu.memory_space<vmem>>, vector<1x1x4x384xbf16>
    %10 = vector.shape_cast %9 : vector<1x1x4x384xbf16> to vector<4x384xbf16>
    %c12 = arith.constant 12 : index
    %c0_16 = arith.constant 0 : index
    %11 = vector.load %arg6[%c12, %c0_16] : memref<36x384xbf16, #tpu.memory_space<vmem>>, vector<4x384xbf16>
    tpu.vector_store %arg6[%c12, %c0_16], %10 {strides = array<i32>} : memref<36x384xbf16, #tpu.memory_space<vmem>>, vector<4x384xbf16>,
    %c0_17 = arith.constant 0 : index
    %c0_18 = arith.constant 0 : index
    %c0_19 = arith.constant 0 : index
    %c19 = arith.constant 19 : index
    %12 = vector.load %arg2[%c0_17, %c0_18, %c0_19, %c19] : memref<1x1x4x512xbf16, #tpu.memory_space<vmem>>, vector<1x1x4x384xbf16>
    %13 = vector.shape_cast %12 : vector<1x1x4x384xbf16> to vector<4x384xbf16>
    %c16 = arith.constant 16 : index
    %c0_20 = arith.constant 0 : index
    %14 = vector.load %arg6[%c16, %c0_20] : memref<36x384xbf16, #tpu.memory_space<vmem>>, vector<4x384xbf16>
    tpu.vector_store %arg6[%c16, %c0_20], %13 {strides = array<i32>} : memref<36x384xbf16, #tpu.memory_space<vmem>>, vector<4x384xbf16>,
    %c0_21 = arith.constant 0 : index
    %c0_22 = arith.constant 0 : index
    %c0_23 = arith.constant 0 : index
    %c20 = arith.constant 20 : index
    %15 = vector.load %arg2[%c0_21, %c0_22, %c0_23, %c20] : memref<1x1x4x512xbf16, #tpu.memory_space<vmem>>, vector<1x1x4x384xbf16>
    %16 = vector.shape_cast %15 : vector<1x1x4x384xbf16> to vector<4x384xbf16>
    %c20_24 = arith.constant 20 : index
    %c0_25 = arith.constant 0 : index
    %17 = vector.load %arg6[%c20_24, %c0_25] : memref<36x384xbf16, #tpu.memory_space<vmem>>, vector<4x384xbf16>
    tpu.vector_store %arg6[%c20_24, %c0_25], %16 {strides = array<i32>} : memref<36x384xbf16, #tpu.memory_space<vmem>>, vector<4x384xbf16>,
    %c0_26 = arith.constant 0 : index
    %c0_27 = arith.constant 0 : index
    %c0_28 = arith.constant 0 : index
    %c36 = arith.constant 36 : index
    %18 = vector.load %arg2[%c0_26, %c0_27, %c0_28, %c36] : memref<1x1x4x512xbf16, #tpu.memory_space<vmem>>, vector<1x1x4x384xbf16>
    %19 = vector.shape_cast %18 : vector<1x1x4x384xbf16> to vector<4x384xbf16>
    %c24 = arith.constant 24 : index
    %c0_29 = arith.constant 0 : index
    %20 = vector.load %arg6[%c24, %c0_29] : memref<36x384xbf16, #tpu.memory_space<vmem>>, vector<4x384xbf16>
    tpu.vector_store %arg6[%c24, %c0_29], %19 {strides = array<i32>} : memref<36x384xbf16, #tpu.memory_space<vmem>>, vector<4x384xbf16>,
    %c0_30 = arith.constant 0 : index
    %c0_31 = arith.constant 0 : index
    %c0_32 = arith.constant 0 : index
    %c37 = arith.constant 37 : index
    %21 = vector.load %arg2[%c0_30, %c0_31, %c0_32, %c37] : memref<1x1x4x512xbf16, #tpu.memory_space<vmem>>, vector<1x1x4x384xbf16>
    %22 = vector.shape_cast %21 : vector<1x1x4x384xbf16> to vector<4x384xbf16>
    %c28 = arith.constant 28 : index
    %c0_33 = arith.constant 0 : index
    %23 = vector.load %arg6[%c28, %c0_33] : memref<36x384xbf16, #tpu.memory_space<vmem>>, vector<4x384xbf16>
    tpu.vector_store %arg6[%c28, %c0_33], %22 {strides = array<i32>} : memref<36x384xbf16, #tpu.memory_space<vmem>>, vector<4x384xbf16>,
    %c0_34 = arith.constant 0 : index
    %c0_35 = arith.constant 0 : index
    %c0_36 = arith.constant 0 : index
    %c38 = arith.constant 38 : index
    %24 = vector.load %arg2[%c0_34, %c0_35, %c0_36, %c38] : memref<1x1x4x512xbf16, #tpu.memory_space<vmem>>, vector<1x1x4x384xbf16>
    %25 = vector.shape_cast %24 : vector<1x1x4x384xbf16> to vector<4x384xbf16>
    %c32 = arith.constant 32 : index
    %c0_37 = arith.constant 0 : index
    %26 = vector.load %arg6[%c32, %c0_37] : memref<36x384xbf16, #tpu.memory_space<vmem>>, vector<4x384xbf16>
    tpu.vector_store %arg6[%c32, %c0_37], %25 {strides = array<i32>} : memref<36x384xbf16, #tpu.memory_space<vmem>>, vector<4x384xbf16>,
    %c0_38 = arith.constant 0 : index
    %c0_39 = arith.constant 0 : index
    %27 = vector.load %arg3[%c0_38, %c0_39] : memref<8x36xbf16, #tpu.memory_space<vmem>>, vector<8x36xbf16>
    %c0_40 = arith.constant 0 : index
    %c0_41 = arith.constant 0 : index
    %28 = vector.load %arg6[%c0_40, %c0_41] : memref<36x384xbf16, #tpu.memory_space<vmem>>, vector<36x384xbf16>
    %cst = arith.constant dense<0.000000e+00> : vector<8x384xf32>
    %29 = tpu.matmul %27, %28, %cst {dimension_numbers = #tpu.dot_dimension_numbers<[1], [0], [0], [1], [0, 0, 1, 1], [], []>} : vector<8x36xbf16>, vector<36x384xbf16>, vector<8x384xf32> -> vector<8x384xf32>
    %c0_42 = arith.constant 0 : index
    %c0_43 = arith.constant 0 : index
    %c0_44 = arith.constant 0 : index
    %30 = vector.load %arg4[%c0_42, %c0_43, %c0_44] : memref<1x1x384xf32, #tpu.memory_space<vmem>>, vector<1x1x384xf32>
    %31 = vector.shape_cast %30 : vector<1x1x384xf32> to vector<1x384xf32>
    %32 = vector.broadcast %31 : vector<1x384xf32> to vector<8x384xf32>
    %33 = arith.mulf %29, %32 : vector<8x384xf32>
    %cst_45 = arith.constant dense<0.000000e+00> : vector<8xf32>
    %34 = vector.multi_reduction <add>, %33, %cst_45 [1] : vector<8x384xf32> to vector<8xf32>
    %35 = vector.shape_cast %34 : vector<8xf32> to vector<8x1xf32>
    %cst_46 = arith.constant 3.906250e-03 : f32
    %36 = vector.broadcast %cst_46 : f32 to vector<8x1xf32>
    %37 = arith.mulf %35, %36 : vector<8x1xf32>
    %38 = arith.mulf %33, %29 : vector<8x384xf32>
    %cst_47 = arith.constant dense<0.000000e+00> : vector<8xf32>
    %39 = vector.multi_reduction <add>, %38, %cst_47 [1] : vector<8x384xf32> to vector<8xf32>
    %40 = vector.shape_cast %39 : vector<8xf32> to vector<8x1xf32>
    %cst_48 = arith.constant 3.906250e-03 : f32
    %41 = vector.broadcast %cst_48 : f32 to vector<8x1xf32>
    %42 = arith.mulf %40, %41 : vector<8x1xf32>
    %43 = arith.mulf %37, %37 : vector<8x1xf32>
    %44 = arith.subf %42, %43 : vector<8x1xf32>
    %cst_49 = arith.constant 0.000000e+00 : f32
    %45 = vector.broadcast %cst_49 : f32 to vector<8x1xf32>
    %46 = arith.maximumf %44, %45 : vector<8x1xf32>
    %47 = vector.broadcast %37 : vector<8x1xf32> to vector<8x384xf32>
    %48 = arith.subf %29, %47 : vector<8x384xf32>
    %cst_50 = arith.constant 9.99999974E-6 : f32
    %49 = vector.broadcast %cst_50 : f32 to vector<8x1xf32>
    %50 = arith.addf %46, %49 : vector<8x1xf32>
    %51 = math.rsqrt %50 : vector<8x1xf32>
    %52 = vector.broadcast %51 : vector<8x1xf32> to vector<8x384xf32>
    %53 = arith.mulf %48, %52 : vector<8x384xf32>
    %cst_51 = arith.constant 0.000000e+00 : f32
    %54 = vector.broadcast %cst_51 : f32 to vector<8x384xf32>
    %55 = arith.maximumf %53, %54 : vector<8x384xf32>
    %c0_52 = arith.constant 0 : index
    %c0_53 = arith.constant 0 : index
    %c0_54 = arith.constant 0 : index
    %c0_55 = arith.constant 0 : index
    %56 = vector.load %arg5[%c0_52, %c0_53, %c0_54, %c0_55] : memref<1x1x8x384xf32, #tpu.memory_space<vmem>>, vector<1x1x8x384xf32>
    %57 = vector.shape_cast %56 : vector<1x1x8x384xf32> to vector<8x384xf32>
    %58 = vector.shape_cast %55 : vector<8x384xf32> to vector<1x1x8x384xf32>
    tpu.vector_store %arg5[%c0_52, %c0_53, %c0_54, %c0_55], %58 {strides = array<i32>} : memref<1x1x8x384xf32, #tpu.memory_space<vmem>>, vector<1x1x8x384xf32>,
    return
  }
  func.func @transform_0(%arg0: i32, %arg1: i32) -> (i32, i32, i32, i32) {
    %c0_i32 = arith.constant 0 : i32
    %c0_i32_0 = arith.constant 0 : i32
    %c0_i32_1 = arith.constant 0 : i32
    return %arg0, %arg1, %c0_i32, %c0_i32_0 : i32, i32, i32, i32
  }
  func.func @transform_1(%arg0: i32, %arg1: i32) -> (i32, i32) {
    %c0_i32 = arith.constant 0 : i32
    %c0_i32_0 = arith.constant 0 : i32
    %c0_i32_1 = arith.constant 0 : i32
    return %c0_i32, %c0_i32_0 : i32, i32
  }
  func.func @transform_2(%arg0: i32, %arg1: i32) -> (i32, i32, i32) {
    %c0_i32 = arith.constant 0 : i32
    %c0_i32_0 = arith.constant 0 : i32
    %c0_i32_1 = arith.constant 0 : i32
    return %arg1, %c0_i32, %c0_i32_0 : i32, i32, i32
  }
  func.func @transform_3(%arg0: i32, %arg1: i32) -> (i32, i32, i32, i32) {
    %c0_i32 = arith.constant 0 : i32
    %c0_i32_0 = arith.constant 0 : i32
    %c0_i32_1 = arith.constant 0 : i32
    return %arg0, %arg1, %c0_i32, %c0_i32_0 : i32, i32, i32, i32
  }
}

</mosaic_0001>

<llo_original>
// kernel: _conv_norm_block.1
$region0: #{_conv_norm_block.1}
  #allocation0 [shape = 'u32[]', space=smem, size = 0x4, offset = 0x4, fixed_abs, tag = 'smem constant byte address 0x4 - core index']
  #allocation1 [shape = 'u32[144,128]{1,0:T(1,128)}', space=vmem, size = 0x12000, scoped, tag = 'internal scratch']
  #allocation2 [shape = 'bf16[36,384]{1,0:T(8,128)(2,1)}', space=vmem, size = 0x7800, scoped, tag = 'scratch operand']
  %s0 = inlined_call_operand.vmem [shape: bf16[2,1,4,512], index: 0, kind: input, shape index: {}]
  %s1 = inlined_call_operand.vmem [shape: bf16[8,36], index: 1, kind: input, shape index: {}]
  %s2 = inlined_call_operand.vmem [shape: f32[1,1,384], index: 2, kind: input, shape index: {}]
  %s3 = inlined_call_operand.vmem [shape: f32[2,1,8,384], index: 3, kind: output, shape index: {}]
  %s4 = sld [smem:[#allocation0]]
  $region45: #{_conv_norm_block.1} parent=0
    _
  %s6 = ssub.s32 1, %s4
  %s7 = scalar_select 0, %s6, %s4
  loop: start=0, step=1, limit=4
  $region2: #{_conv_norm_block.1} parent=0 // loop_pre_header
    _
  $region3: #{_conv_norm_block.1} parent=0 // loop_header
    %s9 = sphi 0, %s13
    %p10 = scmp.ge.s32.totalorder %s9, 4
    %s16 = sphi 0, %s28
    %s17 = sphi 0, %s24
    %s18 = sphi 0, %s16
    %s19 = sphi 0, %s17
    %s20 = sphi 0, %s18
    %s21 = sphi 0, %s19
    %s33 = sphi 0, %s35
    %s36 = sphi 0, %s33
    %s37 = sphi 0, %s36
    %s53 = sphi 0, %s37
    %s57 = sphi 0, %s57
    %s59 = sphi 0, %s57
    %s60 = sphi 0, %s59
    %s74 = sphi 0, %s60
    %s80 = sphi 0, %s82
    %s83 = sphi 0, %s80
    %s84 = sphi 0, %s83
    %s100 = sphi 0, %s84
    %s108 = sphi 0, %s110
    %s111 = sphi 0, %s108
    %s112 = sphi 0, %s111
    %s128 = sphi 0, %s112
  $region4: #{_conv_norm_block.1} parent=0 // loop_header_branch
    %12 = sbr.rel (%p10) target = $region8
  $region5: #{_conv_norm_block.1} parent=0 // loop_body
    %s14 = ssub.s32 %s9, 1
    %s15 = ssub.s32 %s9, 2
    %s22 = sadd.s32 1, %s17
    %p23 = scmp.ge.s32.totalorder %s22, 1
    %s24 = scalar_select %p23, 0, %s22
    %s25 = sadd.s32 1, %s16
    %s26 = scalar_select %p23, %s25, %s16
    %p27 = scmp.ge.s32.totalorder %s26, 2
    %s28 = scalar_select %p27, 0, %s26
    %s29 = ssub.s32 %s16, %s28
    %s30 = ssub.s32 %s17, %s24
    %s31 = sor.u32 %s29, %s30
    %p32 = scmp.eq.s32.totalorder %s31, 0
    %s34 = sadd.s32 %s33, 1
    %s35 = scalar_select %p32, %s33, %s34
    %p38 = pneg %p32
    %p39 = scmp.eq.s32.totalorder %s9, 1
    %p40 = por %p38, %p39
    %p41 = scmp.ne.s32.totalorder %s33, %s36
    %p42 = scmp.eq.s32.totalorder %s9, 0
    %p43 = por %p41, %p42
    %p44 = scmp.ne.s32.totalorder %s33, %s36
    %p45 = scmp.eq.s32.totalorder %s14, 1
    %p46 = por %p44, %p45
    %p47 = scmp.ne.s32.totalorder %s36, %s37
    %p48 = scmp.eq.s32.totalorder %s14, 0
    %p49 = por %p47, %p48
    %p50 = scmp.ne.s32.totalorder %s36, %s37
    %p51 = scmp.eq.s32.totalorder %s15, 1
    %p52 = por %p50, %p51
    %p54 = scmp.ne.s32.totalorder %s37, %s53
    %p55 = scmp.eq.s32.totalorder %s15, 0
    %p56 = por %p54, %p55
    %s58 = sadd.s32 %s57, 1
    %p61 = scmp.eq.s32.totalorder %s9, 1
    %p62 = scmp.ne.s32.totalorder %s57, %s59
    %p63 = scmp.eq.s32.totalorder %s9, 0
    %p64 = por %p62, %p63
    %p65 = scmp.ne.s32.totalorder %s57, %s59
    %p66 = scmp.eq.s32.totalorder %s14, 1
    %p67 = por %p65, %p66
    %p68 = scmp.ne.s32.totalorder %s59, %s60
    %p69 = scmp.eq.s32.totalorder %s14, 0
    %p70 = por %p68, %p69
    %p71 = scmp.ne.s32.totalorder %s59, %s60
    %p72 = scmp.eq.s32.totalorder %s15, 1
    %p73 = por %p71, %p72
    %p75 = scmp.ne.s32.totalorder %s60, %s74
    %p76 = scmp.eq.s32.totalorder %s15, 0
    %p77 = por %p75, %p76
    %s78 = ssub.s32 %s17, %s24
    %p79 = scmp.eq.s32.totalorder %s78, 0
    %s81 = sadd.s32 %s80, 1
    %s82 = scalar_select %p79, %s80, %s81
    %p85 = pneg %p79
    %p86 = scmp.eq.s32.totalorder %s9, 1
    %p87 = por %p85, %p86
    %p88 = scmp.ne.s32.totalorder %s80, %s83
    %p89 = scmp.eq.s32.totalorder %s9, 0
    %p90 = por %p88, %p89
    %p91 = scmp.ne.s32.totalorder %s80, %s83
    %p92 = scmp.eq.s32.totalorder %s14, 1
    %p93 = por %p91, %p92
    %p94 = scmp.ne.s32.totalorder %s83, %s84
    %p95 = scmp.eq.s32.totalorder %s14, 0
    %p96 = por %p94, %p95
    %p97 = scmp.ne.s32.totalorder %s83, %s84
    %p98 = scmp.eq.s32.totalorder %s15, 1
    %p99 = por %p97, %p98
    %p101 = scmp.ne.s32.totalorder %s84, %s100
    %p102 = scmp.eq.s32.totalorder %s15, 0
    %p103 = por %p101, %p102
    %s104 = ssub.s32 %s16, %s28
    %s105 = ssub.s32 %s17, %s24
    %s106 = sor.u32 %s104, %s105
    %p107 = scmp.eq.s32.totalorder %s106, 0
    %s109 = sadd.s32 %s108, 1
    %s110 = scalar_select %p107, %s108, %s109
    %p113 = pneg %p107
    %p114 = scmp.eq.s32.totalorder %s9, 1
    %p115 = por %p113, %p114
    %p116 = scmp.ne.s32.totalorder %s108, %s111
    %p117 = scmp.eq.s32.totalorder %s9, 0
    %p118 = por %p116, %p117
    %p119 = scmp.ne.s32.totalorder %s108, %s111
    %p120 = scmp.eq.s32.totalorder %s14, 1
    %p121 = por %p119, %p120
    %p122 = scmp.ne.s32.totalorder %s111, %s112
    %p123 = scmp.eq.s32.totalorder %s14, 0
    %p124 = por %p122, %p123
    %p125 = scmp.ne.s32.totalorder %s111, %s112
    %p126 = scmp.eq.s32.totalorder %s15, 1
    %p127 = por %p125, %p126
    %p129 = scmp.ne.s32.totalorder %s112, %s128
    %p130 = scmp.eq.s32.totalorder %s15, 0
    %p131 = por %p129, %p130
    %p132 = scmp.le.s32.totalorder 1, %s9
    %p133 = scmp.lt.s32.totalorder %s9, 3
    %p134 = pnand %p132, %p133
    %p135 = pneg %p134
    // Predicated region
    $region9: #{_conv_norm_block.1} parent=5 // pred_check
      _
    $region10: #{_conv_norm_block.1} parent=5 // pred_check_branch
      %137 = sbr.rel (%p134) target = $region12
    $region11: #{_conv_norm_block.1} parent=5 // pred_region
      %s138 = ssub.s32 %s9, 1
      // Predicated region
      $region13: #{_conv_norm_block.1} parent=11 // pred_check
        %p139 = pneg %p70
      $region14: #{_conv_norm_block.1} parent=11 // pred_check_branch
        %141 = sbr.rel (%p139) target = $region16
      $region15: #{_conv_norm_block.1} parent=11 // pred_region
        _
      $region16: #{_conv_norm_block.1} parent=11 // pred_fallthru
        _
      // Predicated region
      $region17: #{_conv_norm_block.1} parent=11 // pred_check
        %p142 = pneg %p96
      $region18: #{_conv_norm_block.1} parent=11 // pred_check_branch
        %144 = sbr.rel (%p142) target = $region20
      $region19: #{_conv_norm_block.1} parent=11 // pred_region
        %p145 = scmp.lt.s32.totalorder %s19, 0
        %s146 = scalar_select %p145, %s19, 0
        %s147 = smul.addr %s146, 3
        %s148 = scalar_lea.vmem %s2, %s147
      $region20: #{_conv_norm_block.1} parent=11 // pred_fallthru
        _
    $region12: #{_conv_norm_block.1} parent=5 // pred_fallthru
      _
    %p149 = scmp.lt.s32.totalorder %s9, 2
    // Predicated region
    $region21: #{_conv_norm_block.1} parent=5 // pred_check
      %p150 = pneg %p149
    $region22: #{_conv_norm_block.1} parent=5 // pred_check_branch
      %152 = sbr.rel (%p150) target = $region24
    $region23: #{_conv_norm_block.1} parent=5 // pred_region
      // Predicated region
      $region25: #{_conv_norm_block.1} parent=23 // pred_check
        %p153 = pneg %p43
      $region26: #{_conv_norm_block.1} parent=23 // pred_check_branch
        %155 = sbr.rel (%p153) target = $region28
      $region27: #{_conv_norm_block.1} parent=23 // pred_region
        %p156 = scmp.lt.s32.totalorder %s16, 1
        %s157 = scalar_select %p156, %s16, 1
        %p158 = scmp.lt.s32.totalorder %s17, 0
        %s159 = scalar_select %p158, %s17, 0
        %s160 = smul.addr %s159, 4
        %s161 = smul.addr %s157, 4
        %s162 = sadd.s32 %s160, %s161
        %s163 = smul.addr %s162, 2
        %s164 = scalar_lea.vmem %s0, %s163
      $region28: #{_conv_norm_block.1} parent=23 // pred_fallthru
        _
    $region24: #{_conv_norm_block.1} parent=5 // pred_fallthru
      _
    %p165 = scmp.le.s32.totalorder 1, %s9
    %p166 = scmp.lt.s32.totalorder %s9, 3
    %p167 = pnand %p165, %p166
    %p168 = pneg %p167
    // Predicated region
    $region29: #{_conv_norm_block.1} parent=5 // pred_check
      _
    $region30: #{_conv_norm_block.1} parent=5 // pred_check_branch
      %170 = sbr.rel (%p167) target = $region32
    $region31: #{_conv_norm_block.1} parent=5 // pred_region
      %s171 = ssub.s32 %s9, 1
      %p172 = scmp.lt.s32.totalorder %s18, 1
      %s173 = scalar_select %p172, %s18, 1
      %p174 = scmp.lt.s32.totalorder %s19, 0
      %s175 = scalar_select %p174, %s19, 0
      %s176 = smul.addr %s175, 4
      %s177 = smul.addr %s173, 4
      %s178 = sadd.s32 %s176, %s177
      %s179 = smul.addr %s178, 2
      %s180 = scalar_lea.vmem %s0, %s179
      %p181 = pneg %p49
      %p182 = pneg %p46
      %p183 = pneg %p70
      %p184 = pneg %p67
      %p185 = scmp.lt.s32.totalorder %s19, 0
      %s186 = scalar_select %p185, %s19, 0
      %s187 = smul.addr %s186, 3
      %s188 = scalar_lea.vmem %s2, %s187
      %p189 = pneg %p96
      %p190 = pneg %p93
      %p191 = pneg %p124
      %p192 = pneg %p121
      %p193 = scmp.lt.s32.totalorder %s18, 1
      %s194 = scalar_select %p193, %s18, 1
      %p195 = scmp.lt.s32.totalorder %s19, 0
      %s196 = scalar_select %p195, %s19, 0
      %s197 = smul.addr %s196, 3
      %s198 = smul.addr %s194, 3
      %s199 = sadd.s32 %s197, %s198
      %s200 = smul.addr %s199, 8
      %s201 = scalar_lea.vmem %s3, %s200
      %p202 = scmp.lt.s32.totalorder %s18, 1
      %s203 = scalar_select %p202, %s18, 1
      %p204 = scmp.lt.s32.totalorder %s19, 0
      %s205 = scalar_select %p204, %s19, 0
      %s206 = smul.addr %s205, 4
      %s207 = smul.addr %s203, 4
      %s208 = sadd.s32 %s206, %s207
      %s209 = smul.addr %s208, 2
      %s210 = scalar_lea.vmem %s0, %s209
      %p211 = scmp.lt.s32.totalorder %s19, 0
      %s212 = scalar_select %p211, %s19, 0
      %s213 = smul.addr %s212, 3
      %s214 = scalar_lea.vmem %s2, %s213
      %p215 = scmp.lt.s32.totalorder %s18, 1
      %s216 = scalar_select %p215, %s18, 1
      %p217 = scmp.lt.s32.totalorder %s19, 0
      %s218 = scalar_select %p217, %s19, 0
      %s219 = smul.addr %s218, 3
      %s220 = smul.addr %s216, 3
      %s221 = sadd.s32 %s219, %s220
      %s222 = smul.addr %s221, 8
      %s223 = scalar_lea.vmem %s3, %s222
      %v225 = vld [vmem:[%s210] sm:$0x3f]
      %v227 = vcombine.high %v225, %v225
      %v229 = vunpack.c.l.s4 1983009808
      %v230 = vunpack.c.0.s8 %v229
      %v231 = vlaneseq
      %v232 = vshrl.u32 %v231, 7
      %v233 = vsub.s32 %v230, %v232
      %v234 = vrot.slane %v225, %v233
      %v236 = vunpack.c.l.s4 1983009808
      %v237 = vunpack.c.0.s8 %v236
      %v238 = vlaneseq
      %v239 = vshrl.u32 %v238, 7
      %v240 = vsub.s32 %v237, %v239
      %v241 = vrot.slane %v227, %v240
      %244 = vst [vmem:[#allocation2] sm:$0x33] %v234
      %245 = vst [vmem:[#allocation2 + $0x8] sm:$0x3] %v241
      %v246 = vld [vmem:[%s210] sm:$0xff]
      %v248 = vcombine.low %v246, %v246
      %v250 = vunpack.c.l.s4 1983009808
      %v251 = vunpack.c.0.s8 %v250
      %v252 = vlaneseq
      %v253 = vshrl.u32 %v252, 7
      %v254 = vsub.s32 %v251, %v253
      %v255 = vrot.slane %v248, %v254
      %v257 = vunpack.c.l.s4 1983009808
      %v258 = vunpack.c.0.s8 %v257
      %v259 = vlaneseq
      %v260 = vshrl.u32 %v259, 7
      %v261 = vsub.s32 %v258, %v260
      %v262 = vrot.slane %v246, %v261
      %263 = vrot.lane.b32.xlu0 %v255, 127
      %v264 = vpop.permute.xlu0 %263
      %265 = vrot.lane.b32.xlu0 %v262, 127
      %v266 = vpop.permute.xlu0 %265
      %v267 = vrot.slane %v264, 4
      %v268 = vrot.slane %v266, 4
      %vm269 = vcmask 1043456
      %v270 = vsel %vm269, %v267, %v268
      %vm271 = vcmask 1039360
      %v272 = vsel %vm271, %v264, %v270
      %v273 = vsel %vm271, %v266, %v268
      %276 = vst [vmem:[#allocation2] sm:$0xcc] %v272
      %277 = vst [vmem:[#allocation2 + $0x8] sm:$0xc] %v273
      %v278 = vld [vmem:[%s210] sm:$0xff]
      %v280 = vcombine.high %v278, %v278
      %v282 = vunpack.c.l.s4 1983009808
      %v283 = vunpack.c.0.s8 %v282
      %v284 = vlaneseq
      %v285 = vshrl.u32 %v284, 7
      %v286 = vsub.s32 %v283, %v285
      %v287 = vrot.slane %v278, %v286
      %v289 = vunpack.c.l.s4 1983009808
      %v290 = vunpack.c.0.s8 %v289
      %v291 = vlaneseq
      %v292 = vshrl.u32 %v291, 7
      %v293 = vsub.s32 %v290, %v292
      %v294 = vrot.slane %v280, %v293
      %295 = vrot.lane.b32.xlu0 %v287, 126
      %v296 = vpop.permute.xlu0 %295
      %297 = vrot.lane.b32.xlu0 %v294, 126
      %v298 = vpop.permute.xlu0 %297
      %v299 = vrot.slane %v296, 4
      %v300 = vrot.slane %v298, 4
      %v301 = vsel %vm269, %v299, %v300
      %vm302 = vcmask 1031168
      %v303 = vsel %vm302, %v296, %v301
      %v304 = vsel %vm302, %v298, %v300
      %307 = vst [vmem:[#allocation2 + $0xc] sm:$0x33] %v303
      %308 = vst [vmem:[#allocation2 + $0x14] sm:$0x3] %v304
      %v309 = vld [vmem:[%s210] sm:$0xff]
      %v311 = vcombine.low %v309, %v309
      %v313 = vunpack.c.l.s4 1983009808
      %v314 = vunpack.c.0.s8 %v313
      %v315 = vlaneseq
      %v316 = vshrl.u32 %v315, 7
      %v317 = vsub.s32 %v314, %v316
      %v318 = vrot.slane %v311, %v317
      %v320 = vunpack.c.l.s4 1983009808
      %v321 = vunpack.c.0.s8 %v320
      %v322 = vlaneseq
      %v323 = vshrl.u32 %v322, 7
      %v324 = vsub.s32 %v321, %v323
      %v325 = vrot.slane %v309, %v324
      %326 = vrot.lane.b32.xlu0 %v318, 110
      %v327 = vpop.permute.xlu0 %326
      %328 = vrot.lane.b32.xlu0 %v325, 110
      %v329 = vpop.permute.xlu0 %328
      %v330 = vrot.slane %v327, 4
      %v331 = vrot.slane %v329, 4
      %v332 = vsel %vm269, %v330, %v331
      %vm333 = vcmask 900096
      %v334 = vsel %vm333, %v327, %v332
      %v335 = vsel %vm333, %v329, %v331
      %338 = vst [vmem:[#allocation2 + $0xc] sm:$0xcc] %v334
      %339 = vst [vmem:[#allocation2 + $0x14] sm:$0xc] %v335
      %v340 = vld [vmem:[%s210] sm:$0xff]
      %v342 = vcombine.high %v340, %v340
      %v344 = vunpack.c.l.s4 1983009808
      %v345 = vunpack.c.0.s8 %v344
      %v346 = vlaneseq
      %v347 = vshrl.u32 %v346, 7
      %v348 = vsub.s32 %v345, %v347
      %v349 = vrot.slane %v340, %v348
      %v351 = vunpack.c.l.s4 1983009808
      %v352 = vunpack.c.0.s8 %v351
      %v353 = vlaneseq
      %v354 = vshrl.u32 %v353, 7
      %v355 = vsub.s32 %v352, %v354
      %v356 = vrot.slane %v342, %v355
      %357 = vrot.lane.b32.xlu0 %v349, 109
      %v358 = vpop.permute.xlu0 %357
      %359 = vrot.lane.b32.xlu0 %v356, 109
      %v360 = vpop.permute.xlu0 %359
      %v361 = vrot.slane %v358, 4
      %v362 = vrot.slane %v360, 4
      %v363 = vsel %vm269, %v361, %v362
      %vm364 = vcmask 891904
      %v365 = vsel %vm364, %v358, %v363
      %v366 = vsel %vm364, %v360, %v362
      %369 = vst [vmem:[#allocation2 + $0x18] sm:$0x33] %v365
      %370 = vst [vmem:[#allocation2 + $0x20] sm:$0x3] %v366
      %v371 = vld [vmem:[%s210] sm:$0xff]
      %v373 = vcombine.low %v371, %v371
      %v375 = vunpack.c.l.s4 1983009808
      %v376 = vunpack.c.0.s8 %v375
      %v377 = vlaneseq
      %v378 = vshrl.u32 %v377, 7
      %v379 = vsub.s32 %v376, %v378
      %v380 = vrot.slane %v373, %v379
      %v382 = vunpack.c.l.s4 1983009808
      %v383 = vunpack.c.0.s8 %v382
      %v384 = vlaneseq
      %v385 = vshrl.u32 %v384, 7
      %v386 = vsub.s32 %v383, %v385
      %v387 = vrot.slane %v371, %v386
      %388 = vrot.lane.b32.xlu0 %v380, 108
      %v389 = vpop.permute.xlu0 %388
      %390 = vrot.lane.b32.xlu0 %v387, 108
      %v391 = vpop.permute.xlu0 %390
      %v392 = vrot.slane %v389, 4
      %v393 = vrot.slane %v391, 4
      %v394 = vsel %vm269, %v392, %v393
      %vm395 = vcmask 883712
      %v396 = vsel %vm395, %v389, %v394
      %v397 = vsel %vm395, %v391, %v393
      %400 = vst [vmem:[#allocation2 + $0x18] sm:$0xcc] %v396
      %401 = vst [vmem:[#allocation2 + $0x20] sm:$0xc] %v397
      %v402 = vld [vmem:[%s210] sm:$0xff]
      %v404 = vcombine.high %v402, %v402
      %v406 = vunpack.c.l.s4 1983009808
      %v407 = vunpack.c.0.s8 %v406
      %v408 = vlaneseq
      %v409 = vshrl.u32 %v408, 7
      %v410 = vsub.s32 %v407, %v409
      %v411 = vrot.slane %v402, %v410
      %v413 = vunpack.c.l.s4 1983009808
      %v414 = vunpack.c.0.s8 %v413
      %v415 = vlaneseq
      %v416 = vshrl.u32 %v415, 7
      %v417 = vsub.s32 %v414, %v416
      %v418 = vrot.slane %v404, %v417
      %419 = vrot.lane.b32.xlu0 %v411, 92
      %v420 = vpop.permute.xlu0 %419
      %421 = vrot.lane.b32.xlu0 %v418, 92
      %v422 = vpop.permute.xlu0 %421
      %v423 = vrot.slane %v420, 4
      %v424 = vrot.slane %v422, 4
      %v425 = vsel %vm269, %v423, %v424
      %vm426 = vcmask 752640
      %v427 = vsel %vm426, %v420, %v425
      %v428 = vsel %vm426, %v422, %v424
      %431 = vst [vmem:[#allocation2 + $0x24] sm:$0x33] %v427
      %432 = vst [vmem:[#allocation2 + $0x2c] sm:$0x3] %v428
      %v433 = vld [vmem:[%s210] sm:$0xff]
      %v435 = vcombine.low %v433, %v433
      %v437 = vunpack.c.l.s4 1983009808
      %v438 = vunpack.c.0.s8 %v437
      %v439 = vlaneseq
      %v440 = vshrl.u32 %v439, 7
      %v441 = vsub.s32 %v438, %v440
      %v442 = vrot.slane %v435, %v441
      %v444 = vunpack.c.l.s4 1983009808
      %v445 = vunpack.c.0.s8 %v444
      %v446 = vlaneseq
      %v447 = vshrl.u32 %v446, 7
      %v448 = vsub.s32 %v445, %v447
      %v449 = vrot.slane %v433, %v448
      %450 = vrot.lane.b32.xlu0 %v442, 91
      %v451 = vpop.permute.xlu0 %450
      %452 = vrot.lane.b32.xlu0 %v449, 91
      %v453 = vpop.permute.xlu0 %452
      %v454 = vrot.slane %v451, 4
      %v455 = vrot.slane %v453, 4
      %v456 = vsel %vm269, %v454, %v455
      %vm457 = vcmask 744448
      %v458 = vsel %vm457, %v451, %v456
      %v459 = vsel %vm457, %v453, %v455
      %462 = vst [vmem:[#allocation2 + $0x24] sm:$0xcc] %v458
      %463 = vst [vmem:[#allocation2 + $0x2c] sm:$0xc] %v459
      %v464 = vld [vmem:[%s210] sm:$0xff]
      %v466 = vcombine.high %v464, %v464
      %v468 = vunpack.c.l.s4 1983009808
      %v469 = vunpack.c.0.s8 %v468
      %v470 = vlaneseq
      %v471 = vshrl.u32 %v470, 7
      %v472 = vsub.s32 %v469, %v471
      %v473 = vrot.slane %v464, %v472
      %v475 = vunpack.c.l.s4 1983009808
      %v476 = vunpack.c.0.s8 %v475
      %v477 = vlaneseq
      %v478 = vshrl.u32 %v477, 7
      %v479 = vsub.s32 %v476, %v478
      %v480 = vrot.slane %v466, %v479
      %481 = vrot.lane.b32.xlu0 %v473, 90
      %v482 = vpop.permute.xlu0 %481
      %483 = vrot.lane.b32.xlu0 %v480, 90
      %v484 = vpop.permute.xlu0 %483
      %v485 = vrot.slane %v482, 4
      %v486 = vrot.slane %v484, 4
      %v487 = vsel %vm269, %v485, %v486
      %vm488 = vcmask 736256
      %v489 = vsel %vm488, %v482, %v487
      %v490 = vsel %vm488, %v484, %v486
      %493 = vst [vmem:[#allocation2 + $0x30] sm:$0x33] %v489
      %494 = vst [vmem:[#allocation2 + $0x38] sm:$0x3] %v490
      %v495 = vld [vmem:[%s1] sm:$0xf]
      %v496 = vld [vmem:[#allocation2] sm:$0xff]
      %v497 = vld [vmem:[#allocation2 + $0x8] sm:$0xf]
      %v498 = vld [vmem:[#allocation2 + $0xc] sm:$0xff]
      %v499 = vld [vmem:[#allocation2 + $0x14] sm:$0xf]
      %v500 = vld [vmem:[#allocation2 + $0x18] sm:$0xff]
      %v501 = vld [vmem:[#allocation2 + $0x20] sm:$0xf]
      %v502 = vld [vmem:[#allocation2 + $0x24] sm:$0xff]
      %v503 = vld [vmem:[#allocation2 + $0x2c] sm:$0xf]
      %v504 = vld [vmem:[#allocation2 + $0x30] sm:$0x33]
      %v505 = vld [vmem:[#allocation2 + $0x38] sm:$0x3]
      %v516 = vunpack.c.l.b16 %v496
      %v517 = vunpack.c.h.b16 %v496
      %v518 = vunpack.c.l.b16 %v497
      %v519 = vunpack.c.l.b16 %v498
      %v520 = vunpack.c.h.b16 %v498
      %v521 = vunpack.c.l.b16 %v499
      %v522 = vunpack.c.l.b16 %v500
      %v523 = vunpack.c.h.b16 %v500
      %v524 = vunpack.c.l.b16 %v501
      %v525 = vunpack.c.l.b16 %v502
      %v526 = vunpack.c.h.b16 %v502
      %v527 = vunpack.c.l.b16 %v503
      %v528 = vunpack.c.l.b16 %v504
      %v529 = vunpack.c.h.b16 %v504
      %v530 = vunpack.c.l.b16 %v505
      %v531 = vpack.c.b16 %v519, %v516
      %v532 = vpack.c.b16 %v520, %v517
      %v533 = vpack.c.b16 %v521, %v518
      %v534 = vpack.c.b16 %v525, %v522
      %v535 = vpack.c.b16 %v526, %v523
      %v536 = vpack.c.b16 %v527, %v524
      %v537 = vpack.c.b16 %v528, %v528
      %v538 = vpack.c.b16 %v529, %v529
      %v539 = vpack.c.b16 %v530, %v530
      %vm546 = vcmask 293888
      %v548 = vsel %vm546, %v495, 0
      %vm550 = vcmask 1041408
      %v552 = vsel %vm550, %v537, 0
      %v555 = vsel %vm550, %v538, 0
      %v558 = vsel %vm550, %v539, 0
      %560 = vmatprep.subr.bf16.mxu0 %v532
      %561 = vmatpush1.bf16.msra.mxu0 %v531
      %562 = vmatprep.subr.bf16.mxu0 %v535
      %563 = vmatpush1.bf16.msra.mxu0 %v534
      %564 = vmatprep.subr.bf16.mxu0 %v555
      %565 = vmatpush1.bf16.msra.mxu0 %v552
      %566 = vmatprep.subr.bf16.mxu0 0
      %567 = vmatpush1.bf16.msra.mxu0 0
      %568 = vmatprep.subr.bf16.mxu0 0
      %569 = vmatpush1.bf16.msra.mxu0 0
      %570 = vmatprep.subr.bf16.mxu0 0
      %571 = vmatpush1.bf16.msra.mxu0 0
      %572 = vmatprep.subr.bf16.mxu0 0
      %573 = vmatpush1.bf16.msra.mxu0 0
      %574 = vmatprep.subr.bf16.mxu0 0
      %575 = vmatpush1.bf16.msra.mxu0 0
      %576 = vmatprep.subr.bf16.mxu0 0
      %577 = vmatpush1.bf16.msra.mxu0 0
      %578 = vmatprep.subr.bf16.mxu0 0
      %579 = vmatpush1.bf16.msra.mxu0 0
      %580 = vmatprep.subr.bf16.mxu0 0
      %581 = vmatpush1.bf16.msra.mxu0 0
      %582 = vmatprep.subr.bf16.mxu0 0
      %583 = vmatpush1.bf16.msra.mxu0 0
      %584 = vmatprep.subr.bf16.mxu0 0
      %585 = vmatpush1.bf16.msra.mxu0 0
      %586 = vmatprep.subr.bf16.mxu0 0
      %587 = vmatpush1.bf16.msra.mxu0 0
      %588 = vmatprep.subr.bf16.mxu0 0
      %589 = vmatpush1.bf16.msra.mxu0 0
      %590 = vmatprep.subr.bf16.mxu0 0
      %591 = vmatpush1.bf16.msra.mxu0 0
      %592 = vmatprep.mubr.bf16.mxu0 0
      %593 = vmatmul.mubr.bf16.gmra.mrb[0].mxu0 %v548
      %v594 = vpop.f32.mrb[0].mxu0
      %v595 = vadd.f32 0.0, %v594
      %v596 = vpop.f32.mrb[0].mxu0
      %v597 = vadd.f32 0.0, %v596
      %v598 = vpop.f32.mrb[0].mxu0
      %v599 = vpop.f32.mrb[0].mxu0
      %600 = vdwg.mxu0
      %601 = vmatprep.subr.bf16.mxu0 0
      %602 = vmatpush1.bf16.msra.mxu0 %v533
      %603 = vmatprep.subr.bf16.mxu0 0
      %604 = vmatpush1.bf16.msra.mxu0 %v536
      %605 = vmatprep.subr.bf16.mxu0 0
      %606 = vmatpush1.bf16.msra.mxu0 %v558
      %607 = vmatprep.subr.bf16.mxu0 0
      %608 = vmatpush1.bf16.msra.mxu0 0
      %609 = vmatprep.subr.bf16.mxu0 0
      %610 = vmatpush1.bf16.msra.mxu0 0
      %611 = vmatprep.subr.bf16.mxu0 0
      %612 = vmatpush1.bf16.msra.mxu0 0
      %613 = vmatprep.subr.bf16.mxu0 0
      %614 = vmatpush1.bf16.msra.mxu0 0
      %615 = vmatprep.subr.bf16.mxu0 0
      %616 = vmatpush1.bf16.msra.mxu0 0
      %617 = vmatprep.subr.bf16.mxu0 0
      %618 = vmatpush1.bf16.msra.mxu0 0
      %619 = vmatprep.subr.bf16.mxu0 0
      %620 = vmatpush1.bf16.msra.mxu0 0
      %621 = vmatprep.subr.bf16.mxu0 0
      %622 = vmatpush1.bf16.msra.mxu0 0
      %623 = vmatprep.subr.bf16.mxu0 0
      %624 = vmatpush1.bf16.msra.mxu0 0
      %625 = vmatprep.subr.bf16.mxu0 0
      %626 = vmatpush1.bf16.msra.mxu0 0
      %627 = vmatprep.subr.bf16.mxu0 0
      %628 = vmatpush1.bf16.msra.mxu0 0
      %629 = vmatprep.subr.bf16.mxu0 0
      %630 = vmatpush1.bf16.msra.mxu0 0
      %631 = vmatprep.subr.bf16.mxu0 0
      %632 = vmatpush1.bf16.msra.mxu0 0
      %633 = vmatprep.mubr.bf16.mxu0 0
      %634 = vmatmul.mubr.bf16.gmra.mrb[0].mxu0 %v548
      %v635 = vpop.f32.mrb[0].mxu0
      %v636 = vadd.f32 0.0, %v635
      %v637 = vpop.f32.mrb[0].mxu0
      %v638 = vpop.f32.mrb[0].mxu0
      %v639 = vpop.f32.mrb[0].mxu0
      %640 = vdwg.mxu0
      %v641 = vld [vmem:[%s214] sm:$0x7]
      %v643 = vlaneseq
      %v644 = vshrl.u32 %v643, 7
      %v645 = vsub.s32 0, %v644
      %v646 = vrot.slane %v641, %v645
      %v647 = vlaneseq
      %v648 = vshrl.u32 %v647, 7
      %v649 = vsub.s32 1, %v648
      %v650 = vrot.slane %v641, %v649
      %v651 = vlaneseq
      %v652 = vshrl.u32 %v651, 7
      %v653 = vsub.s32 2, %v652
      %v654 = vrot.slane %v641, %v653
      %v658 = vmul.f32 %v595, %v646
      %v659 = vmul.f32 %v597, %v650
      %v660 = vmul.f32 %v636, %v654
      %v661 = vadd.f32 %v658, %v659
      %v662 = vadd.f32 %v661, %v660
      %663 = vadd.xlane.f32.xlu0 %v662
      %v664 = vpop.xlane.xlu0 %663
      %v665 = vmul.f32 %v664, 0.00390625
      %v666 = vmul.f32 %v658, %v595
      %v667 = vmul.f32 %v659, %v597
      %v668 = vmul.f32 %v660, %v636
      %v669 = vadd.f32 %v666, %v667
      %v670 = vadd.f32 %v669, %v668
      %671 = vadd.xlane.f32.xlu0 %v670
      %v672 = vpop.xlane.xlu0 %671
      %v673 = vmul.f32 %v672, 0.00390625
      %v674 = vmul.f32 %v665, %v665
      %v675 = vsub.f32 %v673, %v674
      %v676 = vmax.f32 %v675, 0.0
      %v677 = vsub.f32 %v595, %v665
      %v678 = vsub.f32 %v597, %v665
      %v679 = vsub.f32 %v636, %v665
      %v680 = vadd.f32 %v676, 1e-05
      %v681 = vrsqrt.pop %v680
      %v682 = vmul.f32 %v677, %v681
      %v683 = vmul.f32 %v678, %v681
      %v684 = vmul.f32 %v679, %v681
      %v685 = vmax.f32 %v682, 0.0
      %v686 = vmax.f32 %v683, 0.0
      %v687 = vmax.f32 %v684, 0.0
      %688 = vst [vmem:[%s223] sm:$0xff] %v685
      %689 = vst [vmem:[%s223 + $0x8] sm:$0xff] %v686
      %690 = vst [vmem:[%s223 + $0x10] sm:$0xff] %v687
      %p691 = scmp.lt.s32.totalorder %s18, 1
      %s692 = scalar_select %p691, %s18, 1
      %p693 = scmp.lt.s32.totalorder %s19, 0
      %s694 = scalar_select %p693, %s19, 0
      %s695 = smul.addr %s694, 3
      %s696 = smul.addr %s692, 3
      %s697 = sadd.s32 %s695, %s696
      %s698 = smul.addr %s697, 8
      %s699 = scalar_lea.vmem %s3, %s698
      // Predicated region
      $region33: #{_conv_norm_block.1} parent=31 // pred_check
        %p700 = pneg %p121
      $region34: #{_conv_norm_block.1} parent=31 // pred_check_branch
        %702 = sbr.rel (%p700) target = $region36
      $region35: #{_conv_norm_block.1} parent=31 // pred_region
        _
      $region36: #{_conv_norm_block.1} parent=31 // pred_fallthru
        _
    $region32: #{_conv_norm_block.1} parent=5 // pred_fallthru
      _
    %p703 = scmp.le.s32.totalorder 2, %s9
    // Predicated region
    $region37: #{_conv_norm_block.1} parent=5 // pred_check
      %p704 = pneg %p703
    $region38: #{_conv_norm_block.1} parent=5 // pred_check_branch
      %706 = sbr.rel (%p704) target = $region40
    $region39: #{_conv_norm_block.1} parent=5 // pred_region
      %s707 = ssub.s32 %s9, 2
      // Predicated region
      $region41: #{_conv_norm_block.1} parent=39 // pred_check
        %p708 = pneg %p127
      $region42: #{_conv_norm_block.1} parent=39 // pred_check_branch
        %710 = sbr.rel (%p708) target = $region44
      $region43: #{_conv_norm_block.1} parent=39 // pred_region
        %p711 = scmp.lt.s32.totalorder %s20, 1
        %s712 = scalar_select %p711, %s20, 1
        %p713 = scmp.lt.s32.totalorder %s21, 0
        %s714 = scalar_select %p713, %s21, 0
        %s715 = smul.addr %s714, 3
        %s716 = smul.addr %s712, 3
        %s717 = sadd.s32 %s715, %s716
        %s718 = smul.addr %s717, 8
        %s719 = scalar_lea.vmem %s3, %s718
      $region44: #{_conv_norm_block.1} parent=39 // pred_fallthru
        _
    $region40: #{_conv_norm_block.1} parent=5 // pred_fallthru
      _
  $region6: #{_conv_norm_block.1} parent=0 // loop_footer
    %s13 = sadd.s32 1, %s9
  $region7: #{_conv_norm_block.1} parent=0 // loop_footer_branch
    %8 = sbr.rel target = $region3
  $region8: #{_conv_norm_block.1} parent=0 // loop_exit
    _

</llo_original>
